<compile_context>
chip_gen: v7x
topology: tpu7x:2x2x1
jax: 0.10.0
libtpu: 0.0.40
codegen_flags: <defaults>
</compile_context>

<pallas_src>
import math

import jax
import jax.numpy as jnp
from jax import lax
from jax.experimental import pallas as pl
from jax.experimental.pallas import tpu as pltpu


def _round_up(x, m):
    return (x + m - 1) // m * m


def _gcn_kernel(alpha_ref, seq_ref, w_ref, out_ref):
    # seq_ref: (TM, in_ft) VMEM tile; w_ref: (out_ft, in_ft) VMEM (nn.Linear
    # layout, resident across the grid); alpha_ref: (1,) SMEM scalar.
    x = lax.dot_general(
        seq_ref[...],
        w_ref[...],
        dimension_numbers=(((1,), (1,)), ((), ())),  # contract the in_ft dims
        preferred_element_type=jnp.float32,
    )
    a = alpha_ref[0]
    # PReLU with a single shared parameter (nn.PReLU default num_parameters=1).
    out_ref[...] = jnp.where(x > 0, x, a * x).astype(out_ref.dtype)


def _pick_tm(m_rows, in_ft, out_ft, in_itemsize):
    """Pick an M-tile that keeps the double-buffered seq/out tiles (plus the
    resident weight) comfortably inside every generation's scoped VMEM
    (v7x has only 64 MiB physical / 32 MiB scoped default)."""
    budget = 12 * 1024 * 1024                       # bytes for streamed tiles
    per_row = 2 * (in_ft * in_itemsize + out_ft * 4)  # double-buffered in+out
    tm = (budget // per_row) // 8 * 8
    tm = max(8, min(1024, tm))                      # 512-1024 ~ HBM roofline
    tm = min(tm, _round_up(m_rows, 8))              # don't exceed the array
    return tm


def gcn_forward(seq, adj, weight, alpha, sparse=False, compute_dtype=jnp.float32):
    """seq: (B, N, in_ft); adj unused (matches reference forward);
    weight: (out_ft, in_ft) in nn.Linear layout; alpha: scalar PReLU param.
    Set compute_dtype=jnp.bfloat16 on v6e/v7x to halve HBM read traffic
    (MXU still accumulates in f32)."""
    del adj, sparse  # unused by the reference forward pass

    B, N, in_ft = seq.shape
    out_ft = weight.shape[0]
    M = B * N

    itemsize = jnp.dtype(compute_dtype).itemsize
    TM = _pick_tm(M, in_ft, out_ft, itemsize)
    grid_m = pl.cdiv(M, TM)

    seq2d = seq.reshape(M, in_ft).astype(compute_dtype)   # contiguous, no copy
    w = weight.astype(compute_dtype)
    alpha_arr = jnp.asarray(alpha, jnp.float32).reshape(1)

    cost = pl.CostEstimate(
        flops=2 * M * in_ft * out_ft,
        transcendentals=0,
        bytes_accessed=(M * in_ft * itemsize
                        + in_ft * out_ft * itemsize
                        + M * out_ft * 4),
    )

    out2d = pl.pallas_call(
        _gcn_kernel,
        out_shape=jax.ShapeDtypeStruct((M, out_ft), jnp.float32),
        grid=(grid_m,),
        in_specs=[
            pl.BlockSpec(memory_space=pltpu.SMEM),                 # alpha (1,)
            pl.BlockSpec((TM, in_ft), lambda i: (i, 0)),           # seq tile
            pl.BlockSpec((out_ft, in_ft), lambda i: (0, 0)),       # W resident
        ],
        out_specs=pl.BlockSpec((TM, out_ft), lambda i: (i, 0)),
        compiler_params=pltpu.CompilerParams(
            dimension_semantics=("parallel",),
            vmem_limit_bytes=32 * 1024 * 1024,
        ),
        cost_estimate=cost,
    )(alpha_arr, seq2d, w)

    return out2d.reshape(B, N, out_ft)


def init_params(key, in_ft, out_ft):
    """Deterministic parameter init matching the PyTorch module:
    - fc.weight: xavier_uniform_, shape (out_ft, in_ft)
    - PReLU alpha: 0.25 (PyTorch default)
    - bias param exists in the module but is unused in forward."""
    bound = math.sqrt(6.0 / (in_ft + out_ft))
    weight = jax.random.uniform(
        key, (out_ft, in_ft), minval=-bound, maxval=bound, dtype=jnp.float32
    )
    alpha = jnp.float32(0.25)
    return weight, alpha


if __name__ == "__main__":
    key = jax.random.PRNGKey(0)
    k_seq, k_adj, k_w = jax.random.split(key, 3)

    B, N, in_ft, out_ft = 2, 8, 16, 32
    seq = jax.random.normal(k_seq, (B, N, in_ft), dtype=jnp.float32)
    adj = jax.random.normal(k_adj, (B, N, N), dtype=jnp.float32)  # unused by forward

    weight, alpha = init_params(k_w, in_ft, out_ft)

    out = gcn_forward(seq, adj, weight, alpha)
    jax.block_until_ready(out)

    # Reference check in plain JAX (fc -> PReLU)
    ref = seq @ weight.T
    ref = jnp.where(ref > 0, ref, alpha * ref)
    assert out.shape == (B, N, out_ft)
    assert jnp.allclose(out, ref, atol=1e-5, rtol=1e-5)

    print("KERNEL_OK")
</pallas_src>

<mosaic_0001>
module attributes {stable_mosaic.version = 11 : i64} {
  func.func @_gcn_kernel(%arg0: i32, %arg1: memref<1xf32, #tpu.memory_space<smem>>, %arg2: memref<16x16xf32, #tpu.memory_space<vmem>>, %arg3: memref<32x16xf32, #tpu.memory_space<vmem>>, %arg4: memref<16x32xf32, #tpu.memory_space<vmem>>) attributes {dimension_semantics = [#tpu.dimension_semantics<parallel>], iteration_bounds = array<i64: 1>, scalar_prefetch = 0 : i64, scratch_operands = 0 : i64, tpu.core_type = #tpu.core_type<tc>, window_params = [{transform_indices = @transform_0, window_bounds = array<i64: 1>}, {transform_indices = @transform_1, window_bounds = array<i64: 16, 16>}, {pipeline_mode = #tpu.pipeline_mode<synchronous>, transform_indices = @transform_2, window_bounds = array<i64: 32, 16>}, {transform_indices = @transform_3, window_bounds = array<i64: 16, 32>}]} {
    %c0 = arith.constant 0 : index
    %c0_0 = arith.constant 0 : index
    %0 = vector.load %arg2[%c0, %c0_0] : memref<16x16xf32, #tpu.memory_space<vmem>>, vector<16x16xf32>
    %c0_1 = arith.constant 0 : index
    %c0_2 = arith.constant 0 : index
    %1 = vector.load %arg3[%c0_1, %c0_2] : memref<32x16xf32, #tpu.memory_space<vmem>>, vector<32x16xf32>
    %cst = arith.constant dense<0.000000e+00> : vector<16x32xf32>
    %2 = tpu.matmul %0, %1, %cst {dimension_numbers = #tpu.dot_dimension_numbers<[1], [1], [0], [0], [0, 0, 1, 0], [], []>} : vector<16x16xf32>, vector<32x16xf32>, vector<16x32xf32> -> vector<16x32xf32>
    %c0_3 = arith.constant 0 : index
    %3 = memref.load %arg1[%c0_3] : memref<1xf32, #tpu.memory_space<smem>>
    %cst_4 = arith.constant 0.000000e+00 : f32
    %4 = vector.broadcast %cst_4 : f32 to vector<16x32xf32>
    %5 = arith.cmpf ogt, %2, %4 : vector<16x32xf32>
    %6 = vector.broadcast %3 : f32 to vector<16x32xf32>
    %7 = arith.mulf %6, %2 : vector<16x32xf32>
    %8 = arith.select %5, %2, %7 : vector<16x32xi1>, vector<16x32xf32>
    %c0_5 = arith.constant 0 : index
    %c0_6 = arith.constant 0 : index
    %9 = vector.load %arg4[%c0_5, %c0_6] : memref<16x32xf32, #tpu.memory_space<vmem>>, vector<16x32xf32>
    tpu.vector_store %arg4[%c0_5, %c0_6], %8 {strides = array<i32>} : memref<16x32xf32, #tpu.memory_space<vmem>>, vector<16x32xf32>,
    return
  }
  func.func @transform_0(%arg0: i32) -> i32 {
    %c0_i32 = arith.constant 0 : i32
    %c0_i32_0 = arith.constant 0 : i32
    return %c0_i32 : i32
  }
  func.func @transform_1(%arg0: i32) -> (i32, i32) {
    %c0_i32 = arith.constant 0 : i32
    %c0_i32_0 = arith.constant 0 : i32
    return %arg0, %c0_i32 : i32, i32
  }
  func.func @transform_2(%arg0: i32) -> (i32, i32) {
    %c0_i32 = arith.constant 0 : i32
    %c0_i32_0 = arith.constant 0 : i32
    %c0_i32_1 = arith.constant 0 : i32
    return %c0_i32, %c0_i32_0 : i32, i32
  }
  func.func @transform_3(%arg0: i32) -> (i32, i32) {
    %c0_i32 = arith.constant 0 : i32
    %c0_i32_0 = arith.constant 0 : i32
    return %arg0, %c0_i32 : i32, i32
  }
}

</mosaic_0001>

<llo_original>
// kernel: tpu_custom_call.1
$region0: #{tpu_custom_call.1}
  #allocation0 [shape = 'u32[]', space=smem, size = 0x4, offset = 0x4, fixed_abs, tag = 'smem constant byte address 0x4 - core index']
  #allocation1 [shape = 'u32[144,128]{1,0:T(1,128)}', space=vmem, size = 0x12000, scoped, tag = 'internal scratch']
  #allocation2 [shape = 'f32[1]{0:T(128)S(6)}', space=smem, size = 0x200, scoped, tag = 'scoped memory for tpu_custom_call.1']
  %s0 = inlined_call_operand.<no memory space> [shape: f32[1], index: 0, kind: input, shape index: {}]
  %s1 = inlined_call_operand.vmem [shape: f32[16,16], index: 1, kind: input, shape index: {}]
  %s2 = inlined_call_operand.vmem [shape: f32[32,16], index: 2, kind: input, shape index: {}]
  %s3 = inlined_call_operand.hbm [shape: f32[16,32], index: 3, kind: output, shape index: {}]
  %s4 = sld [smem:[#allocation0]]
  $region22: #{tpu_custom_call.1} parent=0
    _
  %s6 = ssub.s32 1, %s4
  %s7 = scalar_select 0, %s6, %s4
  %8 = sst [smem:[#allocation2]] %s0
  $region1: #{tpu_custom_call.1} parent=0
    #allocation3 [shape = 'u8[8192]{0}', space=vmem, size = 0x2000, scoped, tag = 'output window, operand 0, single buffered']
    #allocation4 [shape = 's32[1]{0}', space=sflag, size = 0x4, scoped, tag = 'scoped memory for tpu_custom_call.1']
    %9 = vsyncpa [#allocation4], 0
    // Predicated region
    $region2: #{tpu_custom_call.1} parent=1 // pred_check
      _
    $region3: #{tpu_custom_call.1} parent=1 // pred_check_branch
      %11 = sbr.rel (0) target = $region5
    $region4: #{tpu_custom_call.1} parent=1 // pred_region
      _
    $region5: #{tpu_custom_call.1} parent=1 // pred_fallthru
      _
    // Predicated region
    $region6: #{tpu_custom_call.1} parent=1 // pred_check
      _
    $region7: #{tpu_custom_call.1} parent=1 // pred_check_branch
      %13 = sbr.rel (0) target = $region9
    $region8: #{tpu_custom_call.1} parent=1 // pred_region
      _
    $region9: #{tpu_custom_call.1} parent=1 // pred_fallthru
      _
    // Predicated region
    $region10: #{tpu_custom_call.1} parent=1 // pred_check
      _
    $region11: #{tpu_custom_call.1} parent=1 // pred_check_branch
      %15 = sbr.rel (0) target = $region13
    $region12: #{tpu_custom_call.1} parent=1 // pred_region
      _
    $region13: #{tpu_custom_call.1} parent=1 // pred_fallthru
      _
    %v16 = vld [vmem:[%s1] sm:$0xff]
    %v17 = vld [vmem:[%s1 + $0x8] sm:$0xff]
    %v18 = vld [vmem:[%s2] sm:$0xff]
    %v19 = vld [vmem:[%s2 + $0x8] sm:$0xff]
    %v20 = vld [vmem:[%s2 + $0x10] sm:$0xff]
    %v21 = vld [vmem:[%s2 + $0x18] sm:$0xff]
    %vm22 = vcmask 130048
    %v24 = vsel %vm22, %v16, 0
    %v27 = vsel %vm22, %v17, 0
    %v30 = vsel %vm22, %v18, 0
    %v33 = vsel %vm22, %v19, 0
    %v36 = vsel %vm22, %v20, 0
    %v39 = vsel %vm22, %v21, 0
    %41 = vmatprep.subr.mxu0 0.0
    %42 = vmatpush1.xpose.msra.mxu0 %v30
    %43 = vmatprep.subr.mxu0 0.0
    %44 = vmatpush1.xpose.msra.mxu0 %v33
    %45 = vmatprep.subr.mxu0 0.0
    %46 = vmatpush1.xpose.msra.mxu0 %v36
    %47 = vmatprep.subr.mxu0 0.0
    %48 = vmatpush1.xpose.msra.mxu0 %v39
    %49 = vmatprep.subr.mxu0 0.0
    %50 = vmatpush1.xpose.msra.mxu0 0.0
    %51 = vmatprep.subr.mxu0 0.0
    %52 = vmatpush1.xpose.msra.mxu0 0.0
    %53 = vmatprep.subr.mxu0 0.0
    %54 = vmatpush1.xpose.msra.mxu0 0.0
    %55 = vmatprep.subr.mxu0 0.0
    %56 = vmatpush1.xpose.msra.mxu0 0.0
    %57 = vmatprep.subr.mxu0 0.0
    %58 = vmatpush1.xpose.msra.mxu0 0.0
    %59 = vmatprep.subr.mxu0 0.0
    %60 = vmatpush1.xpose.msra.mxu0 0.0
    %61 = vmatprep.subr.mxu0 0.0
    %62 = vmatpush1.xpose.msra.mxu0 0.0
    %63 = vmatprep.subr.mxu0 0.0
    %64 = vmatpush1.xpose.msra.mxu0 0.0
    %65 = vmatprep.subr.mxu0 0.0
    %66 = vmatpush1.xpose.msra.mxu0 0.0
    %67 = vmatprep.subr.mxu0 0.0
    %68 = vmatpush1.xpose.msra.mxu0 0.0
    %69 = vmatprep.subr.mxu0 0.0
    %70 = vmatpush1.xpose.msra.mxu0 0.0
    %71 = vmatprep.subr.mxu0 0.0
    %72 = vmatpush1.xpose.msra.mxu0 0.0
    %73 = vmatprep.subr.mxu0 0.0
    %74 = vmatpush1.xpose.msra.mxu0 0.0
    %75 = vmatprep.subr.mxu0 0.0
    %76 = vmatpush1.xpose.msra.mxu0 0.0
    %77 = vmatprep.subr.mxu0 0.0
    %78 = vmatpush1.xpose.msra.mxu0 0.0
    %79 = vmatprep.subr.mxu0 0.0
    %80 = vmatpush1.xpose.msra.mxu0 0.0
    %81 = vmatprep.subr.mxu0 0.0
    %82 = vmatpush1.xpose.msra.mxu0 0.0
    %83 = vmatprep.subr.mxu0 0.0
    %84 = vmatpush1.xpose.msra.mxu0 0.0
    %85 = vmatprep.subr.mxu0 0.0
    %86 = vmatpush1.xpose.msra.mxu0 0.0
    %87 = vmatprep.subr.mxu0 0.0
    %88 = vmatpush1.xpose.msra.mxu0 0.0
    %89 = vmatprep.subr.mxu0 0.0
    %90 = vmatpush1.xpose.msra.mxu0 0.0
    %91 = vmatprep.subr.mxu0 0.0
    %92 = vmatpush1.xpose.msra.mxu0 0.0
    %93 = vmatprep.subr.mxu0 0.0
    %94 = vmatpush1.xpose.msra.mxu0 0.0
    %95 = vmatprep.subr.mxu0 0.0
    %96 = vmatpush1.xpose.msra.mxu0 0.0
    %97 = vmatprep.subr.mxu0 0.0
    %98 = vmatpush1.xpose.msra.mxu0 0.0
    %99 = vmatprep.subr.mxu0 0.0
    %100 = vmatpush1.xpose.msra.mxu0 0.0
    %101 = vmatprep.subr.mxu0 0.0
    %102 = vmatpush1.xpose.msra.mxu0 0.0
    %103 = vmatprep.subr.mxu0 0.0
    %104 = vmatpush1.xpose.msra.mxu0 0.0
    %105 = vmatprep.mubr.f32.mxu0 0.0
    %106 = vmatmul.mubr.f32.gmra.mrb[0].mxu0 %v24
    %v107 = vpop.f32.mrb[0].mxu0
    %v108 = vadd.f32 0.0, %v107
    %v109 = vpop.f32.mrb[0].mxu0
    %110 = vmatprep.mubr.f32.mxu0 0.0
    %111 = vmatmul.mubr.f32.gmra.mrb[0].mxu0 %v27
    %v112 = vpop.f32.mrb[0].mxu0
    %v113 = vadd.f32 0.0, %v112
    %v114 = vpop.f32.mrb[0].mxu0
    %115 = vdwg.mxu0
    %s116 = sld [smem:[#allocation2]]
    %vm117 = vcmp.gt.f32.partialorder %v108, 0.0
    %vm118 = vcmp.gt.f32.partialorder %v113, 0.0
    %v119 = vstv %s116
    %v120 = vmul.f32 %v119, %v108
    %v121 = vmul.f32 %v119, %v113
    %v122 = vsel %vm117, %v108, %v120
    %v123 = vsel %vm118, %v113, %v121
    %vm124 = vcmask 261120
    %125 = vst.msk [vmem:[#allocation3] sm:$0xff] %vm124, %v122
    %126 = vst.msk [vmem:[#allocation3 + $0x8] sm:$0xff] %vm124, %v123
    // Predicated region
    $region14: #{tpu_custom_call.1} parent=1 // pred_check
      _
    $region15: #{tpu_custom_call.1} parent=1 // pred_check_branch
      %128 = sbr.rel (0) target = $region17
    $region16: #{tpu_custom_call.1} parent=1 // pred_region
      %s130 = ssub.s32 256, 256
      %131 = vsyncadd [#allocation4], %s130
      %s132 = sshll.u32 [#allocation3], 4
      %s133 = int_to_ptr.vmem [resolvable:$true] %s132
      %138 = dma.vmem_to_hbm [thread:$0]  %s133, 256, %s3, [#allocation4], 128, 128, 8
    $region17: #{tpu_custom_call.1} parent=1 // pred_fallthru
      _
    // Predicated region
    $region18: #{tpu_custom_call.1} parent=1 // pred_check
      _
    $region19: #{tpu_custom_call.1} parent=1 // pred_check_branch
      %140 = sbr.rel (0) target = $region21
    $region20: #{tpu_custom_call.1} parent=1 // pred_region
      %141 = dma.done [#allocation4], 256
    $region21: #{tpu_custom_call.1} parent=1 // pred_fallthru
      _
    %142 = vsyncpa [#allocation4], 1

</llo_original>
